<compile_context>
chip_gen: v7x
topology: tpu7x:2x2x1
jax: 0.10.0
libtpu: 0.0.40
codegen_flags: <defaults>
</compile_context>

<pallas_src>
import functools

import jax
import jax.numpy as jnp
from jax.experimental import pallas as pl
from jax.experimental.pallas import tpu as pltpu


def _gnn_stack_kernel(*refs):
    """refs = (x_ref, [wqkv, gqkv, bqkv, wo, bo] * n_units, o_ref)."""
    x_ref = refs[0]
    o_ref = refs[-1]
    param_refs = refs[1:-1]
    n_units = len(param_refs) // 5

    h = x_ref[...].astype(jnp.float32)

    for i in range(n_units):                       # static unroll over units
        wqkv_ref = param_refs[5 * i + 0]           # [Cin, 3*mid]  bf16
        gqkv = param_refs[5 * i + 1][...]          # [1, 3*mid]    f32
        bqkv = param_refs[5 * i + 2][...]          # [1, 3*mid]    f32
        wo_ref = param_refs[5 * i + 3]             # [mid, Cout]   bf16
        bo = param_refs[5 * i + 4][...]            # [1, Cout]     f32
        mid = wqkv_ref.shape[1] // 3

        # Fused Q|K|V projection: one wide bf16 matmul, f32 accumulation.
        proj = jnp.dot(h.astype(jnp.bfloat16), wqkv_ref[...],
                       preferred_element_type=jnp.float32)

        # BatchNorm1d (training mode): batch mean, biased variance (single pass).
        mean = jnp.mean(proj, axis=0, keepdims=True)
        var = jnp.mean(proj * proj, axis=0, keepdims=True) - mean * mean
        proj = (proj - mean) * jax.lax.rsqrt(var + 1e-5)
        proj = jnp.maximum(proj * gqkv + bqkv, 0.0)          # affine + ReLU

        q = proj[:, 0:mid]
        k = proj[:, mid:2 * mid]
        v = proj[:, 2 * mid:3 * mid]

        # softmax(Q*K, dim=1), numerically stabilized; recip on the EUP.
        s = q * k
        s = s - jnp.max(s, axis=1, keepdims=True)
        e = jnp.exp(s)
        p = e * pl.reciprocal(jnp.sum(e, axis=1, keepdims=True), approx=True)
        o = p * v

        # Output linear (+bias) + ReLU; bf16 matmul, f32 accumulation.
        h = jnp.maximum(
            jnp.dot(o.astype(jnp.bfloat16), wo_ref[...],
                    preferred_element_type=jnp.float32) + bo,
            0.0)

    o_ref[...] = h


def _full_spec(shape):
    # Whole-array block at a single grid point.
    return pl.BlockSpec(shape, lambda shp=shape: tuple(0 for _ in shp))


def gnn_forward_pallas(x, params_list, *, vmem_limit_bytes=32 << 20):
    """Full n-unit GNN forward in one pallas_call. x: [B, Cin] f32."""
    B = x.shape[0]
    cout = params_list[-1]["wo"].shape[1]

    args = [x]
    for p in params_list:
        args += [p["wqkv"], p["gqkv"], p["bqkv"], p["wo"], p["bo"]]

    in_specs = [_full_spec(a.shape) for a in args]
    out_spec = _full_spec((B, cout))

    return pl.pallas_call(
        _gnn_stack_kernel,
        out_shape=jax.ShapeDtypeStruct((B, cout), jnp.float32),
        grid=(),
        in_specs=in_specs,
        out_specs=out_spec,
        compiler_params=pltpu.CompilerParams(vmem_limit_bytes=vmem_limit_bytes),
    )(*args)


gnn_forward = jax.jit(gnn_forward_pallas)


def init_gnn_params(key, in_channels, out_channels,
                    hidden_channels=128, middle_channels=1024, n=4):
    """Kaiming-normal(fan_in) init matching GNN.__init__ shapes.

    Q/K/V weights + BN affine params are pre-concatenated along the output
    feature axis; matmul weights are stored in bf16 (halves weight DMA bytes).
    """
    params = []
    for i in range(n):
        if i == 0:
            cin, cout, mid = in_channels, middle_channels, hidden_channels
        elif i == n - 1:
            cin, cout, mid = middle_channels, out_channels, hidden_channels
        else:
            cin, cout, mid = middle_channels, middle_channels, hidden_channels

        key, kq, kk, kv, ko = jax.random.split(key, 5)

        def kaiming(k, fan_in, fan_out):
            std = (2.0 / fan_in) ** 0.5
            return std * jax.random.normal(k, (fan_in, fan_out), jnp.float32)

        wqkv = jnp.concatenate(
            [kaiming(kq, cin, mid), kaiming(kk, cin, mid), kaiming(kv, cin, mid)],
            axis=1).astype(jnp.bfloat16)

        params.append(dict(
            wqkv=wqkv,                                           # [cin, 3*mid] bf16
            # BatchNorm1d default affine (init_weights skips BatchNorm1d).
            gqkv=jnp.ones((1, 3 * mid), jnp.float32),
            bqkv=jnp.zeros((1, 3 * mid), jnp.float32),
            wo=kaiming(ko, mid, cout).astype(jnp.bfloat16),      # [mid, cout] bf16
            bo=jnp.zeros((1, cout), jnp.float32),                # kaiming zeros bias
        ))
    return params


def _ref_forward(x, params_list):
    """Pure-JAX reference (same bf16 matmul inputs / single-pass var, exact recip)."""
    h = x
    for p in params_list:
        mid = p["wqkv"].shape[1] // 3
        proj = jnp.dot(h.astype(jnp.bfloat16), p["wqkv"],
                       preferred_element_type=jnp.float32)
        mean = jnp.mean(proj, axis=0, keepdims=True)
        var = jnp.mean(proj * proj, axis=0, keepdims=True) - mean * mean
        proj = (proj - mean) * jax.lax.rsqrt(var + 1e-5)
        proj = jnp.maximum(proj * p["gqkv"] + p["bqkv"], 0.0)
        q, k, v = proj[:, :mid], proj[:, mid:2 * mid], proj[:, 2 * mid:]
        att = jax.nn.softmax(q * k, axis=1)
        o = att * v
        out = jnp.dot(o.astype(jnp.bfloat16), p["wo"],
                      preferred_element_type=jnp.float32) + p["bo"]
        h = jnp.maximum(out, 0.0)
    return h


if __name__ == "__main__":
    # Small shapes consistent with the module's forward ([B, in_channels] inputs).
    B = 8
    in_channels = 64
    out_channels = 32
    hidden_channels = 32     # GNN_unit internal ("middle") width
    middle_channels = 128    # width between stacked units
    n = 4

    key = jax.random.PRNGKey(0)
    kx, kp = jax.random.split(key)
    x = jax.random.normal(kx, (B, in_channels), jnp.float32)
    params = init_gnn_params(kp, in_channels, out_channels,
                             hidden_channels, middle_channels, n)

    out = gnn_forward(x, params)
    out = jax.block_until_ready(out)

    ref = _ref_forward(x, params)
    assert out.shape == (B, out_channels)
    assert bool(jnp.all(jnp.isfinite(out)))
    # Tolerance covers approx-reciprocal softmax + MXU accumulation-order effects.
    assert jnp.allclose(out, ref, atol=2e-2, rtol=2e-2), "mismatch vs reference"

    print("KERNEL_OK")
</pallas_src>

<mosaic_0001>
module attributes {stable_mosaic.version = 11 : i64} {
  func.func @_gnn_stack_kernel(%arg0: memref<8x64xf32, #tpu.memory_space<vmem>>, %arg1: memref<64x96xbf16, #tpu.memory_space<vmem>>, %arg2: memref<1x96xf32, #tpu.memory_space<vmem>>, %arg3: memref<1x96xf32, #tpu.memory_space<vmem>>, %arg4: memref<32x128xbf16, #tpu.memory_space<vmem>>, %arg5: memref<1x128xf32, #tpu.memory_space<vmem>>, %arg6: memref<128x96xbf16, #tpu.memory_space<vmem>>, %arg7: memref<1x96xf32, #tpu.memory_space<vmem>>, %arg8: memref<1x96xf32, #tpu.memory_space<vmem>>, %arg9: memref<32x128xbf16, #tpu.memory_space<vmem>>, %arg10: memref<1x128xf32, #tpu.memory_space<vmem>>, %arg11: memref<128x96xbf16, #tpu.memory_space<vmem>>, %arg12: memref<1x96xf32, #tpu.memory_space<vmem>>, %arg13: memref<1x96xf32, #tpu.memory_space<vmem>>, %arg14: memref<32x128xbf16, #tpu.memory_space<vmem>>, %arg15: memref<1x128xf32, #tpu.memory_space<vmem>>, %arg16: memref<128x96xbf16, #tpu.memory_space<vmem>>, %arg17: memref<1x96xf32, #tpu.memory_space<vmem>>, %arg18: memref<1x96xf32, #tpu.memory_space<vmem>>, %arg19: memref<32x32xbf16, #tpu.memory_space<vmem>>, %arg20: memref<1x32xf32, #tpu.memory_space<vmem>>, %arg21: memref<8x32xf32, #tpu.memory_space<vmem>>) attributes {dimension_semantics = [], scalar_prefetch = 0 : i64, scratch_operands = 0 : i64, tpu.core_type = #tpu.core_type<tc>} {
    %c0 = arith.constant 0 : index
    %c0_0 = arith.constant 0 : index
    %0 = vector.load %arg0[%c0, %c0_0] : memref<8x64xf32, #tpu.memory_space<vmem>>, vector<8x64xf32>
    %c0_1 = arith.constant 0 : index
    %c0_2 = arith.constant 0 : index
    %1 = vector.load %arg2[%c0_1, %c0_2] : memref<1x96xf32, #tpu.memory_space<vmem>>, vector<1x96xf32>
    %c0_3 = arith.constant 0 : index
    %c0_4 = arith.constant 0 : index
    %2 = vector.load %arg3[%c0_3, %c0_4] : memref<1x96xf32, #tpu.memory_space<vmem>>, vector<1x96xf32>
    %c0_5 = arith.constant 0 : index
    %c0_6 = arith.constant 0 : index
    %3 = vector.load %arg5[%c0_5, %c0_6] : memref<1x128xf32, #tpu.memory_space<vmem>>, vector<1x128xf32>
    %4 = arith.truncf %0 : vector<8x64xf32> to vector<8x64xbf16>
    %c0_7 = arith.constant 0 : index
    %c0_8 = arith.constant 0 : index
    %5 = vector.load %arg1[%c0_7, %c0_8] : memref<64x96xbf16, #tpu.memory_space<vmem>>, vector<64x96xbf16>
    %cst = arith.constant dense<0.000000e+00> : vector<8x96xf32>
    %6 = tpu.matmul %4, %5, %cst {dimension_numbers = #tpu.dot_dimension_numbers<[1], [0], [0], [1], [0, 0, 1, 1], [], []>} : vector<8x64xbf16>, vector<64x96xbf16>, vector<8x96xf32> -> vector<8x96xf32>
    %cst_9 = arith.constant dense<0.000000e+00> : vector<96xf32>
    %7 = vector.multi_reduction <add>, %6, %cst_9 [0] : vector<8x96xf32> to vector<96xf32>
    %8 = vector.shape_cast %7 : vector<96xf32> to vector<1x96xf32>
    %cst_10 = arith.constant 8.000000e+00 : f32
    %9 = vector.broadcast %cst_10 : f32 to vector<1x96xf32>
    %10 = arith.divf %8, %9 : vector<1x96xf32>
    %11 = arith.mulf %6, %6 : vector<8x96xf32>
    %cst_11 = arith.constant dense<0.000000e+00> : vector<96xf32>
    %12 = vector.multi_reduction <add>, %11, %cst_11 [0] : vector<8x96xf32> to vector<96xf32>
    %13 = vector.shape_cast %12 : vector<96xf32> to vector<1x96xf32>
    %cst_12 = arith.constant 8.000000e+00 : f32
    %14 = vector.broadcast %cst_12 : f32 to vector<1x96xf32>
    %15 = arith.divf %13, %14 : vector<1x96xf32>
    %16 = arith.mulf %10, %10 : vector<1x96xf32>
    %17 = arith.subf %15, %16 : vector<1x96xf32>
    %18 = vector.broadcast %10 : vector<1x96xf32> to vector<8x96xf32>
    %19 = arith.subf %6, %18 : vector<8x96xf32>
    %cst_13 = arith.constant 9.99999974E-6 : f32
    %20 = vector.broadcast %cst_13 : f32 to vector<1x96xf32>
    %21 = arith.addf %17, %20 : vector<1x96xf32>
    %22 = math.rsqrt %21 : vector<1x96xf32>
    %23 = vector.broadcast %22 : vector<1x96xf32> to vector<8x96xf32>
    %24 = arith.mulf %19, %23 : vector<8x96xf32>
    %25 = vector.broadcast %1 : vector<1x96xf32> to vector<8x96xf32>
    %26 = arith.mulf %24, %25 : vector<8x96xf32>
    %27 = vector.broadcast %2 : vector<1x96xf32> to vector<8x96xf32>
    %28 = arith.addf %26, %27 : vector<8x96xf32>
    %cst_14 = arith.constant 0.000000e+00 : f32
    %29 = vector.broadcast %cst_14 : f32 to vector<8x96xf32>
    %30 = arith.maximumf %28, %29 : vector<8x96xf32>
    %31 = vector.extract_strided_slice %30 {offsets = [0, 0], sizes = [8, 32], strides = [1, 1]} : vector<8x96xf32> to vector<8x32xf32>
    %32 = vector.extract_strided_slice %30 {offsets = [0, 32], sizes = [8, 32], strides = [1, 1]} : vector<8x96xf32> to vector<8x32xf32>
    %33 = vector.extract_strided_slice %30 {offsets = [0, 64], sizes = [8, 32], strides = [1, 1]} : vector<8x96xf32> to vector<8x32xf32>
    %34 = arith.mulf %31, %32 : vector<8x32xf32>
    %cst_15 = arith.constant dense<0xFF800000> : vector<8xf32>
    %35 = vector.multi_reduction <maximumf>, %34, %cst_15 [1] : vector<8x32xf32> to vector<8xf32>
    %36 = vector.shape_cast %35 : vector<8xf32> to vector<8x1xf32>
    %37 = vector.broadcast %36 : vector<8x1xf32> to vector<8x32xf32>
    %38 = arith.subf %34, %37 : vector<8x32xf32>
    %39 = math.exp %38 : vector<8x32xf32>
    %cst_16 = arith.constant dense<0.000000e+00> : vector<8xf32>
    %40 = vector.multi_reduction <add>, %39, %cst_16 [1] : vector<8x32xf32> to vector<8xf32>
    %41 = vector.shape_cast %40 : vector<8xf32> to vector<8x1xf32>
    %42 = tpu.reciprocal %41 {approx = true} : vector<8x1xf32> -> vector<8x1xf32>
    %43 = vector.broadcast %42 : vector<8x1xf32> to vector<8x32xf32>
    %44 = arith.mulf %39, %43 : vector<8x32xf32>
    %45 = arith.mulf %44, %33 : vector<8x32xf32>
    %46 = arith.truncf %45 : vector<8x32xf32> to vector<8x32xbf16>
    %c0_17 = arith.constant 0 : index
    %c0_18 = arith.constant 0 : index
    %47 = vector.load %arg4[%c0_17, %c0_18] : memref<32x128xbf16, #tpu.memory_space<vmem>>, vector<32x128xbf16>
    %cst_19 = arith.constant dense<0.000000e+00> : vector<8x128xf32>
    %48 = tpu.matmul %46, %47, %cst_19 {dimension_numbers = #tpu.dot_dimension_numbers<[1], [0], [0], [1], [0, 0, 1, 1], [], []>} : vector<8x32xbf16>, vector<32x128xbf16>, vector<8x128xf32> -> vector<8x128xf32>
    %49 = vector.broadcast %3 : vector<1x128xf32> to vector<8x128xf32>
    %50 = arith.addf %48, %49 : vector<8x128xf32>
    %cst_20 = arith.constant 0.000000e+00 : f32
    %51 = vector.broadcast %cst_20 : f32 to vector<8x128xf32>
    %52 = arith.maximumf %50, %51 : vector<8x128xf32>
    %c0_21 = arith.constant 0 : index
    %c0_22 = arith.constant 0 : index
    %53 = vector.load %arg7[%c0_21, %c0_22] : memref<1x96xf32, #tpu.memory_space<vmem>>, vector<1x96xf32>
    %c0_23 = arith.constant 0 : index
    %c0_24 = arith.constant 0 : index
    %54 = vector.load %arg8[%c0_23, %c0_24] : memref<1x96xf32, #tpu.memory_space<vmem>>, vector<1x96xf32>
    %c0_25 = arith.constant 0 : index
    %c0_26 = arith.constant 0 : index
    %55 = vector.load %arg10[%c0_25, %c0_26] : memref<1x128xf32, #tpu.memory_space<vmem>>, vector<1x128xf32>
    %56 = arith.truncf %52 : vector<8x128xf32> to vector<8x128xbf16>
    %c0_27 = arith.constant 0 : index
    %c0_28 = arith.constant 0 : index
    %57 = vector.load %arg6[%c0_27, %c0_28] : memref<128x96xbf16, #tpu.memory_space<vmem>>, vector<128x96xbf16>
    %cst_29 = arith.constant dense<0.000000e+00> : vector<8x96xf32>
    %58 = tpu.matmul %56, %57, %cst_29 {dimension_numbers = #tpu.dot_dimension_numbers<[1], [0], [0], [1], [0, 0, 1, 1], [], []>} : vector<8x128xbf16>, vector<128x96xbf16>, vector<8x96xf32> -> vector<8x96xf32>
    %cst_30 = arith.constant dense<0.000000e+00> : vector<96xf32>
    %59 = vector.multi_reduction <add>, %58, %cst_30 [0] : vector<8x96xf32> to vector<96xf32>
    %60 = vector.shape_cast %59 : vector<96xf32> to vector<1x96xf32>
    %cst_31 = arith.constant 8.000000e+00 : f32
    %61 = vector.broadcast %cst_31 : f32 to vector<1x96xf32>
    %62 = arith.divf %60, %61 : vector<1x96xf32>
    %63 = arith.mulf %58, %58 : vector<8x96xf32>
    %cst_32 = arith.constant dense<0.000000e+00> : vector<96xf32>
    %64 = vector.multi_reduction <add>, %63, %cst_32 [0] : vector<8x96xf32> to vector<96xf32>
    %65 = vector.shape_cast %64 : vector<96xf32> to vector<1x96xf32>
    %cst_33 = arith.constant 8.000000e+00 : f32
    %66 = vector.broadcast %cst_33 : f32 to vector<1x96xf32>
    %67 = arith.divf %65, %66 : vector<1x96xf32>
    %68 = arith.mulf %62, %62 : vector<1x96xf32>
    %69 = arith.subf %67, %68 : vector<1x96xf32>
    %70 = vector.broadcast %62 : vector<1x96xf32> to vector<8x96xf32>
    %71 = arith.subf %58, %70 : vector<8x96xf32>
    %cst_34 = arith.constant 9.99999974E-6 : f32
    %72 = vector.broadcast %cst_34 : f32 to vector<1x96xf32>
    %73 = arith.addf %69, %72 : vector<1x96xf32>
    %74 = math.rsqrt %73 : vector<1x96xf32>
    %75 = vector.broadcast %74 : vector<1x96xf32> to vector<8x96xf32>
    %76 = arith.mulf %71, %75 : vector<8x96xf32>
    %77 = vector.broadcast %53 : vector<1x96xf32> to vector<8x96xf32>
    %78 = arith.mulf %76, %77 : vector<8x96xf32>
    %79 = vector.broadcast %54 : vector<1x96xf32> to vector<8x96xf32>
    %80 = arith.addf %78, %79 : vector<8x96xf32>
    %cst_35 = arith.constant 0.000000e+00 : f32
    %81 = vector.broadcast %cst_35 : f32 to vector<8x96xf32>
    %82 = arith.maximumf %80, %81 : vector<8x96xf32>
    %83 = vector.extract_strided_slice %82 {offsets = [0, 0], sizes = [8, 32], strides = [1, 1]} : vector<8x96xf32> to vector<8x32xf32>
    %84 = vector.extract_strided_slice %82 {offsets = [0, 32], sizes = [8, 32], strides = [1, 1]} : vector<8x96xf32> to vector<8x32xf32>
    %85 = vector.extract_strided_slice %82 {offsets = [0, 64], sizes = [8, 32], strides = [1, 1]} : vector<8x96xf32> to vector<8x32xf32>
    %86 = arith.mulf %83, %84 : vector<8x32xf32>
    %cst_36 = arith.constant dense<0xFF800000> : vector<8xf32>
    %87 = vector.multi_reduction <maximumf>, %86, %cst_36 [1] : vector<8x32xf32> to vector<8xf32>
    %88 = vector.shape_cast %87 : vector<8xf32> to vector<8x1xf32>
    %89 = vector.broadcast %88 : vector<8x1xf32> to vector<8x32xf32>
    %90 = arith.subf %86, %89 : vector<8x32xf32>
    %91 = math.exp %90 : vector<8x32xf32>
    %cst_37 = arith.constant dense<0.000000e+00> : vector<8xf32>
    %92 = vector.multi_reduction <add>, %91, %cst_37 [1] : vector<8x32xf32> to vector<8xf32>
    %93 = vector.shape_cast %92 : vector<8xf32> to vector<8x1xf32>
    %94 = tpu.reciprocal %93 {approx = true} : vector<8x1xf32> -> vector<8x1xf32>
    %95 = vector.broadcast %94 : vector<8x1xf32> to vector<8x32xf32>
    %96 = arith.mulf %91, %95 : vector<8x32xf32>
    %97 = arith.mulf %96, %85 : vector<8x32xf32>
    %98 = arith.truncf %97 : vector<8x32xf32> to vector<8x32xbf16>
    %c0_38 = arith.constant 0 : index
    %c0_39 = arith.constant 0 : index
    %99 = vector.load %arg9[%c0_38, %c0_39] : memref<32x128xbf16, #tpu.memory_space<vmem>>, vector<32x128xbf16>
    %cst_40 = arith.constant dense<0.000000e+00> : vector<8x128xf32>
    %100 = tpu.matmul %98, %99, %cst_40 {dimension_numbers = #tpu.dot_dimension_numbers<[1], [0], [0], [1], [0, 0, 1, 1], [], []>} : vector<8x32xbf16>, vector<32x128xbf16>, vector<8x128xf32> -> vector<8x128xf32>
    %101 = vector.broadcast %55 : vector<1x128xf32> to vector<8x128xf32>
    %102 = arith.addf %100, %101 : vector<8x128xf32>
    %cst_41 = arith.constant 0.000000e+00 : f32
    %103 = vector.broadcast %cst_41 : f32 to vector<8x128xf32>
    %104 = arith.maximumf %102, %103 : vector<8x128xf32>
    %c0_42 = arith.constant 0 : index
    %c0_43 = arith.constant 0 : index
    %105 = vector.load %arg12[%c0_42, %c0_43] : memref<1x96xf32, #tpu.memory_space<vmem>>, vector<1x96xf32>
    %c0_44 = arith.constant 0 : index
    %c0_45 = arith.constant 0 : index
    %106 = vector.load %arg13[%c0_44, %c0_45] : memref<1x96xf32, #tpu.memory_space<vmem>>, vector<1x96xf32>
    %c0_46 = arith.constant 0 : index
    %c0_47 = arith.constant 0 : index
    %107 = vector.load %arg15[%c0_46, %c0_47] : memref<1x128xf32, #tpu.memory_space<vmem>>, vector<1x128xf32>
    %108 = arith.truncf %104 : vector<8x128xf32> to vector<8x128xbf16>
    %c0_48 = arith.constant 0 : index
    %c0_49 = arith.constant 0 : index
    %109 = vector.load %arg11[%c0_48, %c0_49] : memref<128x96xbf16, #tpu.memory_space<vmem>>, vector<128x96xbf16>
    %cst_50 = arith.constant dense<0.000000e+00> : vector<8x96xf32>
    %110 = tpu.matmul %108, %109, %cst_50 {dimension_numbers = #tpu.dot_dimension_numbers<[1], [0], [0], [1], [0, 0, 1, 1], [], []>} : vector<8x128xbf16>, vector<128x96xbf16>, vector<8x96xf32> -> vector<8x96xf32>
    %cst_51 = arith.constant dense<0.000000e+00> : vector<96xf32>
    %111 = vector.multi_reduction <add>, %110, %cst_51 [0] : vector<8x96xf32> to vector<96xf32>
    %112 = vector.shape_cast %111 : vector<96xf32> to vector<1x96xf32>
    %cst_52 = arith.constant 8.000000e+00 : f32
    %113 = vector.broadcast %cst_52 : f32 to vector<1x96xf32>
    %114 = arith.divf %112, %113 : vector<1x96xf32>
    %115 = arith.mulf %110, %110 : vector<8x96xf32>
    %cst_53 = arith.constant dense<0.000000e+00> : vector<96xf32>
    %116 = vector.multi_reduction <add>, %115, %cst_53 [0] : vector<8x96xf32> to vector<96xf32>
    %117 = vector.shape_cast %116 : vector<96xf32> to vector<1x96xf32>
    %cst_54 = arith.constant 8.000000e+00 : f32
    %118 = vector.broadcast %cst_54 : f32 to vector<1x96xf32>
    %119 = arith.divf %117, %118 : vector<1x96xf32>
    %120 = arith.mulf %114, %114 : vector<1x96xf32>
    %121 = arith.subf %119, %120 : vector<1x96xf32>
    %122 = vector.broadcast %114 : vector<1x96xf32> to vector<8x96xf32>
    %123 = arith.subf %110, %122 : vector<8x96xf32>
    %cst_55 = arith.constant 9.99999974E-6 : f32
    %124 = vector.broadcast %cst_55 : f32 to vector<1x96xf32>
    %125 = arith.addf %121, %124 : vector<1x96xf32>
    %126 = math.rsqrt %125 : vector<1x96xf32>
    %127 = vector.broadcast %126 : vector<1x96xf32> to vector<8x96xf32>
    %128 = arith.mulf %123, %127 : vector<8x96xf32>
    %129 = vector.broadcast %105 : vector<1x96xf32> to vector<8x96xf32>
    %130 = arith.mulf %128, %129 : vector<8x96xf32>
    %131 = vector.broadcast %106 : vector<1x96xf32> to vector<8x96xf32>
    %132 = arith.addf %130, %131 : vector<8x96xf32>
    %cst_56 = arith.constant 0.000000e+00 : f32
    %133 = vector.broadcast %cst_56 : f32 to vector<8x96xf32>
    %134 = arith.maximumf %132, %133 : vector<8x96xf32>
    %135 = vector.extract_strided_slice %134 {offsets = [0, 0], sizes = [8, 32], strides = [1, 1]} : vector<8x96xf32> to vector<8x32xf32>
    %136 = vector.extract_strided_slice %134 {offsets = [0, 32], sizes = [8, 32], strides = [1, 1]} : vector<8x96xf32> to vector<8x32xf32>
    %137 = vector.extract_strided_slice %134 {offsets = [0, 64], sizes = [8, 32], strides = [1, 1]} : vector<8x96xf32> to vector<8x32xf32>
    %138 = arith.mulf %135, %136 : vector<8x32xf32>
    %cst_57 = arith.constant dense<0xFF800000> : vector<8xf32>
    %139 = vector.multi_reduction <maximumf>, %138, %cst_57 [1] : vector<8x32xf32> to vector<8xf32>
    %140 = vector.shape_cast %139 : vector<8xf32> to vector<8x1xf32>
    %141 = vector.broadcast %140 : vector<8x1xf32> to vector<8x32xf32>
    %142 = arith.subf %138, %141 : vector<8x32xf32>
    %143 = math.exp %142 : vector<8x32xf32>
    %cst_58 = arith.constant dense<0.000000e+00> : vector<8xf32>
    %144 = vector.multi_reduction <add>, %143, %cst_58 [1] : vector<8x32xf32> to vector<8xf32>
    %145 = vector.shape_cast %144 : vector<8xf32> to vector<8x1xf32>
    %146 = tpu.reciprocal %145 {approx = true} : vector<8x1xf32> -> vector<8x1xf32>
    %147 = vector.broadcast %146 : vector<8x1xf32> to vector<8x32xf32>
    %148 = arith.mulf %143, %147 : vector<8x32xf32>
    %149 = arith.mulf %148, %137 : vector<8x32xf32>
    %150 = arith.truncf %149 : vector<8x32xf32> to vector<8x32xbf16>
    %c0_59 = arith.constant 0 : index
    %c0_60 = arith.constant 0 : index
    %151 = vector.load %arg14[%c0_59, %c0_60] : memref<32x128xbf16, #tpu.memory_space<vmem>>, vector<32x128xbf16>
    %cst_61 = arith.constant dense<0.000000e+00> : vector<8x128xf32>
    %152 = tpu.matmul %150, %151, %cst_61 {dimension_numbers = #tpu.dot_dimension_numbers<[1], [0], [0], [1], [0, 0, 1, 1], [], []>} : vector<8x32xbf16>, vector<32x128xbf16>, vector<8x128xf32> -> vector<8x128xf32>
    %153 = vector.broadcast %107 : vector<1x128xf32> to vector<8x128xf32>
    %154 = arith.addf %152, %153 : vector<8x128xf32>
    %cst_62 = arith.constant 0.000000e+00 : f32
    %155 = vector.broadcast %cst_62 : f32 to vector<8x128xf32>
    %156 = arith.maximumf %154, %155 : vector<8x128xf32>
    %c0_63 = arith.constant 0 : index
    %c0_64 = arith.constant 0 : index
    %157 = vector.load %arg17[%c0_63, %c0_64] : memref<1x96xf32, #tpu.memory_space<vmem>>, vector<1x96xf32>
    %c0_65 = arith.constant 0 : index
    %c0_66 = arith.constant 0 : index
    %158 = vector.load %arg18[%c0_65, %c0_66] : memref<1x96xf32, #tpu.memory_space<vmem>>, vector<1x96xf32>
    %c0_67 = arith.constant 0 : index
    %c0_68 = arith.constant 0 : index
    %159 = vector.load %arg20[%c0_67, %c0_68] : memref<1x32xf32, #tpu.memory_space<vmem>>, vector<1x32xf32>
    %160 = arith.truncf %156 : vector<8x128xf32> to vector<8x128xbf16>
    %c0_69 = arith.constant 0 : index
    %c0_70 = arith.constant 0 : index
    %161 = vector.load %arg16[%c0_69, %c0_70] : memref<128x96xbf16, #tpu.memory_space<vmem>>, vector<128x96xbf16>
    %cst_71 = arith.constant dense<0.000000e+00> : vector<8x96xf32>
    %162 = tpu.matmul %160, %161, %cst_71 {dimension_numbers = #tpu.dot_dimension_numbers<[1], [0], [0], [1], [0, 0, 1, 1], [], []>} : vector<8x128xbf16>, vector<128x96xbf16>, vector<8x96xf32> -> vector<8x96xf32>
    %cst_72 = arith.constant dense<0.000000e+00> : vector<96xf32>
    %163 = vector.multi_reduction <add>, %162, %cst_72 [0] : vector<8x96xf32> to vector<96xf32>
    %164 = vector.shape_cast %163 : vector<96xf32> to vector<1x96xf32>
    %cst_73 = arith.constant 8.000000e+00 : f32
    %165 = vector.broadcast %cst_73 : f32 to vector<1x96xf32>
    %166 = arith.divf %164, %165 : vector<1x96xf32>
    %167 = arith.mulf %162, %162 : vector<8x96xf32>
    %cst_74 = arith.constant dense<0.000000e+00> : vector<96xf32>
    %168 = vector.multi_reduction <add>, %167, %cst_74 [0] : vector<8x96xf32> to vector<96xf32>
    %169 = vector.shape_cast %168 : vector<96xf32> to vector<1x96xf32>
    %cst_75 = arith.constant 8.000000e+00 : f32
    %170 = vector.broadcast %cst_75 : f32 to vector<1x96xf32>
    %171 = arith.divf %169, %170 : vector<1x96xf32>
    %172 = arith.mulf %166, %166 : vector<1x96xf32>
    %173 = arith.subf %171, %172 : vector<1x96xf32>
    %174 = vector.broadcast %166 : vector<1x96xf32> to vector<8x96xf32>
    %175 = arith.subf %162, %174 : vector<8x96xf32>
    %cst_76 = arith.constant 9.99999974E-6 : f32
    %176 = vector.broadcast %cst_76 : f32 to vector<1x96xf32>
    %177 = arith.addf %173, %176 : vector<1x96xf32>
    %178 = math.rsqrt %177 : vector<1x96xf32>
    %179 = vector.broadcast %178 : vector<1x96xf32> to vector<8x96xf32>
    %180 = arith.mulf %175, %179 : vector<8x96xf32>
    %181 = vector.broadcast %157 : vector<1x96xf32> to vector<8x96xf32>
    %182 = arith.mulf %180, %181 : vector<8x96xf32>
    %183 = vector.broadcast %158 : vector<1x96xf32> to vector<8x96xf32>
    %184 = arith.addf %182, %183 : vector<8x96xf32>
    %cst_77 = arith.constant 0.000000e+00 : f32
    %185 = vector.broadcast %cst_77 : f32 to vector<8x96xf32>
    %186 = arith.maximumf %184, %185 : vector<8x96xf32>
    %187 = vector.extract_strided_slice %186 {offsets = [0, 0], sizes = [8, 32], strides = [1, 1]} : vector<8x96xf32> to vector<8x32xf32>
    %188 = vector.extract_strided_slice %186 {offsets = [0, 32], sizes = [8, 32], strides = [1, 1]} : vector<8x96xf32> to vector<8x32xf32>
    %189 = vector.extract_strided_slice %186 {offsets = [0, 64], sizes = [8, 32], strides = [1, 1]} : vector<8x96xf32> to vector<8x32xf32>
    %190 = arith.mulf %187, %188 : vector<8x32xf32>
    %cst_78 = arith.constant dense<0xFF800000> : vector<8xf32>
    %191 = vector.multi_reduction <maximumf>, %190, %cst_78 [1] : vector<8x32xf32> to vector<8xf32>
    %192 = vector.shape_cast %191 : vector<8xf32> to vector<8x1xf32>
    %193 = vector.broadcast %192 : vector<8x1xf32> to vector<8x32xf32>
    %194 = arith.subf %190, %193 : vector<8x32xf32>
    %195 = math.exp %194 : vector<8x32xf32>
    %cst_79 = arith.constant dense<0.000000e+00> : vector<8xf32>
    %196 = vector.multi_reduction <add>, %195, %cst_79 [1] : vector<8x32xf32> to vector<8xf32>
    %197 = vector.shape_cast %196 : vector<8xf32> to vector<8x1xf32>
    %198 = tpu.reciprocal %197 {approx = true} : vector<8x1xf32> -> vector<8x1xf32>
    %199 = vector.broadcast %198 : vector<8x1xf32> to vector<8x32xf32>
    %200 = arith.mulf %195, %199 : vector<8x32xf32>
    %201 = arith.mulf %200, %189 : vector<8x32xf32>
    %202 = arith.truncf %201 : vector<8x32xf32> to vector<8x32xbf16>
    %c0_80 = arith.constant 0 : index
    %c0_81 = arith.constant 0 : index
    %203 = vector.load %arg19[%c0_80, %c0_81] : memref<32x32xbf16, #tpu.memory_space<vmem>>, vector<32x32xbf16>
    %cst_82 = arith.constant dense<0.000000e+00> : vector<8x32xf32>
    %204 = tpu.matmul %202, %203, %cst_82 {dimension_numbers = #tpu.dot_dimension_numbers<[1], [0], [0], [1], [0, 0, 1, 1], [], []>} : vector<8x32xbf16>, vector<32x32xbf16>, vector<8x32xf32> -> vector<8x32xf32>
    %205 = vector.broadcast %159 : vector<1x32xf32> to vector<8x32xf32>
    %206 = arith.addf %204, %205 : vector<8x32xf32>
    %cst_83 = arith.constant 0.000000e+00 : f32
    %207 = vector.broadcast %cst_83 : f32 to vector<8x32xf32>
    %208 = arith.maximumf %206, %207 : vector<8x32xf32>
    %c0_84 = arith.constant 0 : index
    %c0_85 = arith.constant 0 : index
    %209 = vector.load %arg21[%c0_84, %c0_85] : memref<8x32xf32, #tpu.memory_space<vmem>>, vector<8x32xf32>
    tpu.vector_store %arg21[%c0_84, %c0_85], %208 {strides = array<i32>} : memref<8x32xf32, #tpu.memory_space<vmem>>, vector<8x32xf32>,
    return
  }
}

</mosaic_0001>

<llo_original>
// kernel: gnn_forward_pallas.1
$region0: #{gnn_forward_pallas.1}
  #allocation0 [shape = 'u32[]', space=smem, size = 0x4, offset = 0x4, fixed_abs, tag = 'smem constant byte address 0x4 - core index']
  #allocation1 [shape = 'u32[144,128]{1,0:T(1,128)}', space=vmem, size = 0x12000, scoped, tag = 'internal scratch']
  %s0 = inlined_call_operand.vmem [shape: f32[8,64], index: 0, kind: input, shape index: {}]
  %s1 = inlined_call_operand.vmem [shape: bf16[64,96], index: 1, kind: input, shape index: {}]
  %s2 = inlined_call_operand.vmem [shape: f32[1,96], index: 2, kind: input, shape index: {}]
  %s3 = inlined_call_operand.vmem [shape: f32[1,96], index: 3, kind: input, shape index: {}]
  %s4 = inlined_call_operand.vmem [shape: bf16[32,128], index: 4, kind: input, shape index: {}]
  %s5 = inlined_call_operand.vmem [shape: f32[1,128], index: 5, kind: input, shape index: {}]
  %s6 = inlined_call_operand.vmem [shape: bf16[128,96], index: 6, kind: input, shape index: {}]
  %s7 = inlined_call_operand.vmem [shape: f32[1,96], index: 7, kind: input, shape index: {}]
  %s8 = inlined_call_operand.vmem [shape: f32[1,96], index: 8, kind: input, shape index: {}]
  %s9 = inlined_call_operand.vmem [shape: bf16[32,128], index: 9, kind: input, shape index: {}]
  %s10 = inlined_call_operand.vmem [shape: f32[1,128], index: 10, kind: input, shape index: {}]
  %s11 = inlined_call_operand.vmem [shape: bf16[128,96], index: 11, kind: input, shape index: {}]
  %s12 = inlined_call_operand.vmem [shape: f32[1,96], index: 12, kind: input, shape index: {}]
  %s13 = inlined_call_operand.vmem [shape: f32[1,96], index: 13, kind: input, shape index: {}]
  %s14 = inlined_call_operand.vmem [shape: bf16[32,128], index: 14, kind: input, shape index: {}]
  %s15 = inlined_call_operand.vmem [shape: f32[1,128], index: 15, kind: input, shape index: {}]
  %s16 = inlined_call_operand.vmem [shape: bf16[128,96], index: 16, kind: input, shape index: {}]
  %s17 = inlined_call_operand.vmem [shape: f32[1,96], index: 17, kind: input, shape index: {}]
  %s18 = inlined_call_operand.vmem [shape: f32[1,96], index: 18, kind: input, shape index: {}]
  %s19 = inlined_call_operand.vmem [shape: bf16[32,32], index: 19, kind: input, shape index: {}]
  %s20 = inlined_call_operand.vmem [shape: f32[1,32], index: 20, kind: input, shape index: {}]
  %s21 = inlined_call_operand.hbm [shape: f32[8,32], index: 21, kind: output, shape index: {}]
  %s22 = sld [smem:[#allocation0]]
  $region94: #{gnn_forward_pallas.1} parent=0
    _
  %s24 = ssub.s32 1, %s22
  %s25 = scalar_select 0, %s24, %s22
  $region1: #{gnn_forward_pallas.1} parent=0
    #allocation2 [shape = 'u8[4096]{0}', space=vmem, size = 0x1000, scoped, tag = 'output window, operand 0, single buffered']
    #allocation3 [shape = 's32[1]{0}', space=sflag, size = 0x4, scoped, tag = 'scoped memory for gnn_forward_pallas.1']
    %26 = vsyncpa [#allocation3], 0
    // Predicated region
    $region2: #{gnn_forward_pallas.1} parent=1 // pred_check
      _
    $region3: #{gnn_forward_pallas.1} parent=1 // pred_check_branch
      %28 = sbr.rel (0) target = $region5
    $region4: #{gnn_forward_pallas.1} parent=1 // pred_region
      _
    $region5: #{gnn_forward_pallas.1} parent=1 // pred_fallthru
      _
    // Predicated region
    $region6: #{gnn_forward_pallas.1} parent=1 // pred_check
      _
    $region7: #{gnn_forward_pallas.1} parent=1 // pred_check_branch
      %30 = sbr.rel (0) target = $region9
    $region8: #{gnn_forward_pallas.1} parent=1 // pred_region
      _
    $region9: #{gnn_forward_pallas.1} parent=1 // pred_fallthru
      _
    // Predicated region
    $region10: #{gnn_forward_pallas.1} parent=1 // pred_check
      _
    $region11: #{gnn_forward_pallas.1} parent=1 // pred_check_branch
      %32 = sbr.rel (0) target = $region13
    $region12: #{gnn_forward_pallas.1} parent=1 // pred_region
      _
    $region13: #{gnn_forward_pallas.1} parent=1 // pred_fallthru
      _
    // Predicated region
    $region14: #{gnn_forward_pallas.1} parent=1 // pred_check
      _
    $region15: #{gnn_forward_pallas.1} parent=1 // pred_check_branch
      %34 = sbr.rel (0) target = $region17
    $region16: #{gnn_forward_pallas.1} parent=1 // pred_region
      _
    $region17: #{gnn_forward_pallas.1} parent=1 // pred_fallthru
      _
    // Predicated region
    $region18: #{gnn_forward_pallas.1} parent=1 // pred_check
      _
    $region19: #{gnn_forward_pallas.1} parent=1 // pred_check_branch
      %36 = sbr.rel (0) target = $region21
    $region20: #{gnn_forward_pallas.1} parent=1 // pred_region
      _
    $region21: #{gnn_forward_pallas.1} parent=1 // pred_fallthru
      _
    // Predicated region
    $region22: #{gnn_forward_pallas.1} parent=1 // pred_check
      _
    $region23: #{gnn_forward_pallas.1} parent=1 // pred_check_branch
      %38 = sbr.rel (0) target = $region25
    $region24: #{gnn_forward_pallas.1} parent=1 // pred_region
      _
    $region25: #{gnn_forward_pallas.1} parent=1 // pred_fallthru
      _
    // Predicated region
    $region26: #{gnn_forward_pallas.1} parent=1 // pred_check
      _
    $region27: #{gnn_forward_pallas.1} parent=1 // pred_check_branch
      %40 = sbr.rel (0) target = $region29
    $region28: #{gnn_forward_pallas.1} parent=1 // pred_region
      _
    $region29: #{gnn_forward_pallas.1} parent=1 // pred_fallthru
      _
    // Predicated region
    $region30: #{gnn_forward_pallas.1} parent=1 // pred_check
      _
    $region31: #{gnn_forward_pallas.1} parent=1 // pred_check_branch
      %42 = sbr.rel (0) target = $region33
    $region32: #{gnn_forward_pallas.1} parent=1 // pred_region
      _
    $region33: #{gnn_forward_pallas.1} parent=1 // pred_fallthru
      _
    // Predicated region
    $region34: #{gnn_forward_pallas.1} parent=1 // pred_check
      _
    $region35: #{gnn_forward_pallas.1} parent=1 // pred_check_branch
      %44 = sbr.rel (0) target = $region37
    $region36: #{gnn_forward_pallas.1} parent=1 // pred_region
      _
    $region37: #{gnn_forward_pallas.1} parent=1 // pred_fallthru
      _
    // Predicated region
    $region38: #{gnn_forward_pallas.1} parent=1 // pred_check
      _
    $region39: #{gnn_forward_pallas.1} parent=1 // pred_check_branch
      %46 = sbr.rel (0) target = $region41
    $region40: #{gnn_forward_pallas.1} parent=1 // pred_region
      _
    $region41: #{gnn_forward_pallas.1} parent=1 // pred_fallthru
      _
    // Predicated region
    $region42: #{gnn_forward_pallas.1} parent=1 // pred_check
      _
    $region43: #{gnn_forward_pallas.1} parent=1 // pred_check_branch
      %48 = sbr.rel (0) target = $region45
    $region44: #{gnn_forward_pallas.1} parent=1 // pred_region
      _
    $region45: #{gnn_forward_pallas.1} parent=1 // pred_fallthru
      _
    // Predicated region
    $region46: #{gnn_forward_pallas.1} parent=1 // pred_check
      _
    $region47: #{gnn_forward_pallas.1} parent=1 // pred_check_branch
      %50 = sbr.rel (0) target = $region49
    $region48: #{gnn_forward_pallas.1} parent=1 // pred_region
      _
    $region49: #{gnn_forward_pallas.1} parent=1 // pred_fallthru
      _
    // Predicated region
    $region50: #{gnn_forward_pallas.1} parent=1 // pred_check
      _
    $region51: #{gnn_forward_pallas.1} parent=1 // pred_check_branch
      %52 = sbr.rel (0) target = $region53
    $region52: #{gnn_forward_pallas.1} parent=1 // pred_region
      _
    $region53: #{gnn_forward_pallas.1} parent=1 // pred_fallthru
      _
    // Predicated region
    $region54: #{gnn_forward_pallas.1} parent=1 // pred_check
      _
    $region55: #{gnn_forward_pallas.1} parent=1 // pred_check_branch
      %54 = sbr.rel (0) target = $region57
    $region56: #{gnn_forward_pallas.1} parent=1 // pred_region
      _
    $region57: #{gnn_forward_pallas.1} parent=1 // pred_fallthru
      _
    // Predicated region
    $region58: #{gnn_forward_pallas.1} parent=1 // pred_check
      _
    $region59: #{gnn_forward_pallas.1} parent=1 // pred_check_branch
      %56 = sbr.rel (0) target = $region61
    $region60: #{gnn_forward_pallas.1} parent=1 // pred_region
      _
    $region61: #{gnn_forward_pallas.1} parent=1 // pred_fallthru
      _
    // Predicated region
    $region62: #{gnn_forward_pallas.1} parent=1 // pred_check
      _
    $region63: #{gnn_forward_pallas.1} parent=1 // pred_check_branch
      %58 = sbr.rel (0) target = $region65
    $region64: #{gnn_forward_pallas.1} parent=1 // pred_region
      _
    $region65: #{gnn_forward_pallas.1} parent=1 // pred_fallthru
      _
    // Predicated region
    $region66: #{gnn_forward_pallas.1} parent=1 // pred_check
      _
    $region67: #{gnn_forward_pallas.1} parent=1 // pred_check_branch
      %60 = sbr.rel (0) target = $region69
    $region68: #{gnn_forward_pallas.1} parent=1 // pred_region
      _
    $region69: #{gnn_forward_pallas.1} parent=1 // pred_fallthru
      _
    // Predicated region
    $region70: #{gnn_forward_pallas.1} parent=1 // pred_check
      _
    $region71: #{gnn_forward_pallas.1} parent=1 // pred_check_branch
      %62 = sbr.rel (0) target = $region73
    $region72: #{gnn_forward_pallas.1} parent=1 // pred_region
      _
    $region73: #{gnn_forward_pallas.1} parent=1 // pred_fallthru
      _
    // Predicated region
    $region74: #{gnn_forward_pallas.1} parent=1 // pred_check
      _
    $region75: #{gnn_forward_pallas.1} parent=1 // pred_check_branch
      %64 = sbr.rel (0) target = $region77
    $region76: #{gnn_forward_pallas.1} parent=1 // pred_region
      _
    $region77: #{gnn_forward_pallas.1} parent=1 // pred_fallthru
      _
    // Predicated region
    $region78: #{gnn_forward_pallas.1} parent=1 // pred_check
      _
    $region79: #{gnn_forward_pallas.1} parent=1 // pred_check_branch
      %66 = sbr.rel (0) target = $region81
    $region80: #{gnn_forward_pallas.1} parent=1 // pred_region
      _
    $region81: #{gnn_forward_pallas.1} parent=1 // pred_fallthru
      _
    // Predicated region
    $region82: #{gnn_forward_pallas.1} parent=1 // pred_check
      _
    $region83: #{gnn_forward_pallas.1} parent=1 // pred_check_branch
      %68 = sbr.rel (0) target = $region85
    $region84: #{gnn_forward_pallas.1} parent=1 // pred_region
      _
    $region85: #{gnn_forward_pallas.1} parent=1 // pred_fallthru
      _
    %v70 = vld [vmem:[%s0] sm:$0xff]
    %v71 = vld [vmem:[%s2] sm:$0x1]
    %v72 = vld [vmem:[%s3] sm:$0x1]
    %v73 = vld [vmem:[%s5] sm:$0x1]
    %v74 = vpack.c.bf16 %v70, %v70
    %v75 = vld [vmem:[%s1] sm:$0xf]
    %v76 = vld [vmem:[%s1 + $0x4] sm:$0xf]
    %v77 = vld [vmem:[%s1 + $0x8] sm:$0xf]
    %v78 = vld [vmem:[%s1 + $0xc] sm:$0xf]
    %v79 = vld [vmem:[%s1 + $0x10] sm:$0xf]
    %v80 = vld [vmem:[%s1 + $0x14] sm:$0xf]
    %v81 = vld [vmem:[%s1 + $0x18] sm:$0xf]
    %v82 = vld [vmem:[%s1 + $0x1c] sm:$0xf]
    %v91 = vunpack.c.l.b16 %v75
    %v92 = vunpack.c.l.b16 %v76
    %v93 = vunpack.c.l.b16 %v77
    %v94 = vunpack.c.l.b16 %v78
    %v95 = vunpack.c.l.b16 %v79
    %v96 = vunpack.c.l.b16 %v80
    %v97 = vunpack.c.l.b16 %v81
    %v98 = vunpack.c.l.b16 %v82
    %v99 = vpack.c.b16 %v92, %v91
    %v100 = vpack.c.b16 %v94, %v93
    %v101 = vpack.c.b16 %v96, %v95
    %v102 = vpack.c.b16 %v98, %v97
    %vm107 = vcmask 523264
    %v109 = vsel %vm107, %v74, 0
    %111 = vmatprep.subr.bf16.mxu0 0
    %112 = vmatpush1.bf16.msra.mxu0 %v99
    %113 = vmatprep.subr.bf16.mxu0 0
    %114 = vmatpush1.bf16.msra.mxu0 %v100
    %115 = vmatprep.subr.bf16.mxu0 0
    %116 = vmatpush1.bf16.msra.mxu0 %v101
    %117 = vmatprep.subr.bf16.mxu0 0
    %118 = vmatpush1.bf16.msra.mxu0 %v102
    %119 = vmatprep.subr.bf16.mxu0 0
    %120 = vmatpush1.bf16.msra.mxu0 0
    %121 = vmatprep.subr.bf16.mxu0 0
    %122 = vmatpush1.bf16.msra.mxu0 0
    %123 = vmatprep.subr.bf16.mxu0 0
    %124 = vmatpush1.bf16.msra.mxu0 0
    %125 = vmatprep.subr.bf16.mxu0 0
    %126 = vmatpush1.bf16.msra.mxu0 0
    %127 = vmatprep.subr.bf16.mxu0 0
    %128 = vmatpush1.bf16.msra.mxu0 0
    %129 = vmatprep.subr.bf16.mxu0 0
    %130 = vmatpush1.bf16.msra.mxu0 0
    %131 = vmatprep.subr.bf16.mxu0 0
    %132 = vmatpush1.bf16.msra.mxu0 0
    %133 = vmatprep.subr.bf16.mxu0 0
    %134 = vmatpush1.bf16.msra.mxu0 0
    %135 = vmatprep.subr.bf16.mxu0 0
    %136 = vmatpush1.bf16.msra.mxu0 0
    %137 = vmatprep.subr.bf16.mxu0 0
    %138 = vmatpush1.bf16.msra.mxu0 0
    %139 = vmatprep.subr.bf16.mxu0 0
    %140 = vmatpush1.bf16.msra.mxu0 0
    %141 = vmatprep.subr.bf16.mxu0 0
    %142 = vmatpush1.bf16.msra.mxu0 0
    %143 = vmatprep.mubr.bf16.mxu0 0
    %144 = vmatmul.mubr.bf16.gmra.mrb[0].mxu0 %v109
    %v145 = vpop.f32.mrb[0].mxu0
    %v146 = vadd.f32 0.0, %v145
    %v147 = vpop.f32.mrb[0].mxu0
    %v148 = vpop.f32.mrb[0].mxu0
    %v149 = vpop.f32.mrb[0].mxu0
    %150 = vdwg.mxu0
    %vm151 = vcmask 785408
    %v152 = vsel %vm151, %v146, 0.0
    %v153 = vrot.slane %v152, 4
    %v154 = vadd.f32 %v152, %v153
    %v155 = vrot.slane %v154, 2
    %v156 = vadd.f32 %v154, %v155
    %v157 = vrot.slane %v156, 1
    %v158 = vadd.f32 %v156, %v157
    %v159 = vrcp.pop 8.0
    %v160 = vmul.f32 %v158, %v159
    %v161 = vmul.f32 %v146, %v146
    %v162 = vsel %vm151, %v161, 0.0
    %v163 = vrot.slane %v162, 4
    %v164 = vadd.f32 %v162, %v163
    %v165 = vrot.slane %v164, 2
    %v166 = vadd.f32 %v164, %v165
    %v167 = vrot.slane %v166, 1
    %v168 = vadd.f32 %v166, %v167
    %v169 = vmul.f32 %v168, %v159
    %v170 = vmul.f32 %v160, %v160
    %v171 = vsub.f32 %v169, %v170
    %v172 = vsub.f32 %v146, %v160
    %v173 = vadd.f32 %v171, 1e-05
    %v174 = vrsqrt.pop %v173
    %v175 = vmul.f32 %v172, %v174
    %v177 = vlaneseq
    %v178 = vshrl.u32 %v177, 7
    %v179 = vsub.s32 0, %v178
    %v180 = vrot.slane %v71, %v179
    %v182 = vmul.f32 %v175, %v180
    %v184 = vlaneseq
    %v185 = vshrl.u32 %v184, 7
    %v186 = vsub.s32 0, %v185
    %v187 = vrot.slane %v72, %v186
    %v189 = vadd.f32 %v182, %v187
    %v190 = vmax.f32 %v189, 0.0
    %192 = vrot.lane.b32.xlu0 %v190, 96
    %v193 = vpop.permute.xlu0 %192
    %v195 = vmul.f32 %v190, %v193
    %vm196 = vcmask 261120
    %v197 = vsel %vm196, %v195, -inf
    %198 = vmax.xlane.f32.xlu0 %v197
    %v199 = vpop.xlane.xlu0 %198
    %v200 = vsub.f32 %v195, %v199
    %v201 = vmul.f32 %v200, 1.442695
    %v202 = vpow.pop %v201
    %v203 = vsel %vm196, %v202, 0.0
    %204 = vadd.xlane.f32.xlu0 %v203
    %v205 = vpop.xlane.xlu0 %204
    %v206 = vrcp.pop %v205
    %v207 = vmul.f32 %v202, %v206
    %208 = vrot.lane.b32.xlu0 %v190, 64
    %v209 = vpop.permute.xlu0 %208
    %v211 = vmul.f32 %v207, %v209
    %v212 = vpack.c.bf16 %v211, %v211
    %v213 = vld [vmem:[%s4] sm:$0xf]
    %v214 = vld [vmem:[%s4 + $0x4] sm:$0xf]
    %v215 = vld [vmem:[%s4 + $0x8] sm:$0xf]
    %v216 = vld [vmem:[%s4 + $0xc] sm:$0xf]
    %v218 = vlaneseq
    %v219 = vshrl.u32 %v218, 7
    %v220 = vsub.s32 0, %v219
    %v221 = vrot.slane %v73, %v220
    %v227 = vunpack.c.l.b16 %v213
    %v228 = vunpack.c.l.b16 %v214
    %v229 = vunpack.c.l.b16 %v215
    %v230 = vunpack.c.l.b16 %v216
    %v231 = vpack.c.b16 %v228, %v227
    %v232 = vpack.c.b16 %v230, %v229
    %v236 = vsel %vm196, %v212, 0
    %238 = vmatprep.subr.bf16.mxu0 0
    %239 = vmatpush1.bf16.msra.mxu0 %v231
    %240 = vmatprep.subr.bf16.mxu0 0
    %241 = vmatpush1.bf16.msra.mxu0 %v232
    %242 = vmatprep.subr.bf16.mxu0 0
    %243 = vmatpush1.bf16.msra.mxu0 0
    %244 = vmatprep.subr.bf16.mxu0 0
    %245 = vmatpush1.bf16.msra.mxu0 0
    %246 = vmatprep.subr.bf16.mxu0 0
    %247 = vmatpush1.bf16.msra.mxu0 0
    %248 = vmatprep.subr.bf16.mxu0 0
    %249 = vmatpush1.bf16.msra.mxu0 0
    %250 = vmatprep.subr.bf16.mxu0 0
    %251 = vmatpush1.bf16.msra.mxu0 0
    %252 = vmatprep.subr.bf16.mxu0 0
    %253 = vmatpush1.bf16.msra.mxu0 0
    %254 = vmatprep.subr.bf16.mxu0 0
    %255 = vmatpush1.bf16.msra.mxu0 0
    %256 = vmatprep.subr.bf16.mxu0 0
    %257 = vmatpush1.bf16.msra.mxu0 0
    %258 = vmatprep.subr.bf16.mxu0 0
    %259 = vmatpush1.bf16.msra.mxu0 0
    %260 = vmatprep.subr.bf16.mxu0 0
    %261 = vmatpush1.bf16.msra.mxu0 0
    %262 = vmatprep.subr.bf16.mxu0 0
    %263 = vmatpush1.bf16.msra.mxu0 0
    %264 = vmatprep.subr.bf16.mxu0 0
    %265 = vmatpush1.bf16.msra.mxu0 0
    %266 = vmatprep.subr.bf16.mxu0 0
    %267 = vmatpush1.bf16.msra.mxu0 0
    %268 = vmatprep.subr.bf16.mxu0 0
    %269 = vmatpush1.bf16.msra.mxu0 0
    %270 = vmatprep.mubr.bf16.mxu0 0
    %271 = vmatmul.mubr.bf16.gmra.mrb[0].mxu0 %v236
    %v272 = vpop.f32.mrb[0].mxu0
    %v273 = vadd.f32 %v221, %v272
    %v274 = vpop.f32.mrb[0].mxu0
    %v275 = vpop.f32.mrb[0].mxu0
    %v276 = vpop.f32.mrb[0].mxu0
    %277 = vdwg.mxu0
    %v278 = vmax.f32 %v273, 0.0
    %v279 = vld [vmem:[%s7] sm:$0x1]
    %v280 = vld [vmem:[%s8] sm:$0x1]
    %v281 = vld [vmem:[%s10] sm:$0x1]
    %v282 = vpack.c.bf16 %v278, %v278
    %v283 = vld [vmem:[%s6] sm:$0xf]
    %v284 = vld [vmem:[%s6 + $0x4] sm:$0xf]
    %v285 = vld [vmem:[%s6 + $0x8] sm:$0xf]
    %v286 = vld [vmem:[%s6 + $0xc] sm:$0xf]
    %v287 = vld [vmem:[%s6 + $0x10] sm:$0xf]
    %v288 = vld [vmem:[%s6 + $0x14] sm:$0xf]
    %v289 = vld [vmem:[%s6 + $0x18] sm:$0xf]
    %v290 = vld [vmem:[%s6 + $0x1c] sm:$0xf]
    %v291 = vld [vmem:[%s6 + $0x20] sm:$0xf]
    %v292 = vld [vmem:[%s6 + $0x24] sm:$0xf]
    %v293 = vld [vmem:[%s6 + $0x28] sm:$0xf]
    %v294 = vld [vmem:[%s6 + $0x2c] sm:$0xf]
    %v295 = vld [vmem:[%s6 + $0x30] sm:$0xf]
    %v296 = vld [vmem:[%s6 + $0x34] sm:$0xf]
    %v297 = vld [vmem:[%s6 + $0x38] sm:$0xf]
    %v298 = vld [vmem:[%s6 + $0x3c] sm:$0xf]
    %v315 = vunpack.c.l.b16 %v283
    %v316 = vunpack.c.l.b16 %v284
    %v317 = vunpack.c.l.b16 %v285
    %v318 = vunpack.c.l.b16 %v286
    %v319 = vunpack.c.l.b16 %v287
    %v320 = vunpack.c.l.b16 %v288
    %v321 = vunpack.c.l.b16 %v289
    %v322 = vunpack.c.l.b16 %v290
    %v323 = vunpack.c.l.b16 %v291
    %v324 = vunpack.c.l.b16 %v292
    %v325 = vunpack.c.l.b16 %v293
    %v326 = vunpack.c.l.b16 %v294
    %v327 = vunpack.c.l.b16 %v295
    %v328 = vunpack.c.l.b16 %v296
    %v329 = vunpack.c.l.b16 %v297
    %v330 = vunpack.c.l.b16 %v298
    %v331 = vpack.c.b16 %v316, %v315
    %v332 = vpack.c.b16 %v318, %v317
    %v333 = vpack.c.b16 %v320, %v319
    %v334 = vpack.c.b16 %v322, %v321
    %v335 = vpack.c.b16 %v324, %v323
    %v336 = vpack.c.b16 %v326, %v325
    %v337 = vpack.c.b16 %v328, %v327
    %v338 = vpack.c.b16 %v330, %v329
    %347 = vmatprep.subr.bf16.mxu0 0
    %348 = vmatpush1.bf16.msra.mxu0 %v331
    %349 = vmatprep.subr.bf16.mxu0 0
    %350 = vmatpush1.bf16.msra.mxu0 %v332
    %351 = vmatprep.subr.bf16.mxu0 0
    %352 = vmatpush1.bf16.msra.mxu0 %v333
    %353 = vmatprep.subr.bf16.mxu0 0
    %354 = vmatpush1.bf16.msra.mxu0 %v334
    %355 = vmatprep.subr.bf16.mxu0 0
    %356 = vmatpush1.bf16.msra.mxu0 %v335
    %357 = vmatprep.subr.bf16.mxu0 0
    %358 = vmatpush1.bf16.msra.mxu0 %v336
    %359 = vmatprep.subr.bf16.mxu0 0
    %360 = vmatpush1.bf16.msra.mxu0 %v337
    %361 = vmatprep.subr.bf16.mxu0 0
    %362 = vmatpush1.bf16.msra.mxu0 %v338
    %363 = vmatprep.subr.bf16.mxu0 0
    %364 = vmatpush1.bf16.msra.mxu0 0
    %365 = vmatprep.subr.bf16.mxu0 0
    %366 = vmatpush1.bf16.msra.mxu0 0
    %367 = vmatprep.subr.bf16.mxu0 0
    %368 = vmatpush1.bf16.msra.mxu0 0
    %369 = vmatprep.subr.bf16.mxu0 0
    %370 = vmatpush1.bf16.msra.mxu0 0
    %371 = vmatprep.subr.bf16.mxu0 0
    %372 = vmatpush1.bf16.msra.mxu0 0
    %373 = vmatprep.subr.bf16.mxu0 0
    %374 = vmatpush1.bf16.msra.mxu0 0
    %375 = vmatprep.subr.bf16.mxu0 0
    %376 = vmatpush1.bf16.msra.mxu0 0
    %377 = vmatprep.subr.bf16.mxu0 0
    %378 = vmatpush1.bf16.msra.mxu0 0
    %379 = vmatprep.mubr.bf16.mxu0 0
    %380 = vmatmul.mubr.bf16.gmra.mrb[0].mxu0 %v282
    %v381 = vpop.f32.mrb[0].mxu0
    %v382 = vadd.f32 0.0, %v381
    %v383 = vpop.f32.mrb[0].mxu0
    %v384 = vpop.f32.mrb[0].mxu0
    %v385 = vpop.f32.mrb[0].mxu0
    %386 = vdwg.mxu0
    %v387 = vsel %vm151, %v382, 0.0
    %v388 = vrot.slane %v387, 4
    %v389 = vadd.f32 %v387, %v388
    %v390 = vrot.slane %v389, 2
    %v391 = vadd.f32 %v389, %v390
    %v392 = vrot.slane %v391, 1
    %v393 = vadd.f32 %v391, %v392
    %v394 = vmul.f32 %v393, %v159
    %v395 = vmul.f32 %v382, %v382
    %v396 = vsel %vm151, %v395, 0.0
    %v397 = vrot.slane %v396, 4
    %v398 = vadd.f32 %v396, %v397
    %v399 = vrot.slane %v398, 2
    %v400 = vadd.f32 %v398, %v399
    %v401 = vrot.slane %v400, 1
    %v402 = vadd.f32 %v400, %v401
    %v403 = vmul.f32 %v402, %v159
    %v404 = vmul.f32 %v394, %v394
    %v405 = vsub.f32 %v403, %v404
    %v406 = vsub.f32 %v382, %v394
    %v407 = vadd.f32 %v405, 1e-05
    %v408 = vrsqrt.pop %v407
    %v409 = vmul.f32 %v406, %v408
    %v411 = vlaneseq
    %v412 = vshrl.u32 %v411, 7
    %v413 = vsub.s32 0, %v412
    %v414 = vrot.slane %v279, %v413
    %v416 = vmul.f32 %v409, %v414
    %v418 = vlaneseq
    %v419 = vshrl.u32 %v418, 7
    %v420 = vsub.s32 0, %v419
    %v421 = vrot.slane %v280, %v420
    %v423 = vadd.f32 %v416, %v421
    %v424 = vmax.f32 %v423, 0.0
    %426 = vrot.lane.b32.xlu0 %v424, 96
    %v427 = vpop.permute.xlu0 %426
    %v429 = vmul.f32 %v424, %v427
    %v430 = vsel %vm196, %v429, -inf
    %431 = vmax.xlane.f32.xlu0 %v430
    %v432 = vpop.xlane.xlu0 %431
    %v433 = vsub.f32 %v429, %v432
    %v434 = vmul.f32 %v433, 1.442695
    %v435 = vpow.pop %v434
    %v436 = vsel %vm196, %v435, 0.0
    %437 = vadd.xlane.f32.xlu0 %v436
    %v438 = vpop.xlane.xlu0 %437
    %v439 = vrcp.pop %v438
    %v440 = vmul.f32 %v435, %v439
    %441 = vrot.lane.b32.xlu0 %v424, 64
    %v442 = vpop.permute.xlu0 %441
    %v444 = vmul.f32 %v440, %v442
    %v445 = vpack.c.bf16 %v444, %v444
    %v446 = vld [vmem:[%s9] sm:$0xf]
    %v447 = vld [vmem:[%s9 + $0x4] sm:$0xf]
    %v448 = vld [vmem:[%s9 + $0x8] sm:$0xf]
    %v449 = vld [vmem:[%s9 + $0xc] sm:$0xf]
    %v451 = vlaneseq
    %v452 = vshrl.u32 %v451, 7
    %v453 = vsub.s32 0, %v452
    %v454 = vrot.slane %v281, %v453
    %v460 = vunpack.c.l.b16 %v446
    %v461 = vunpack.c.l.b16 %v447
    %v462 = vunpack.c.l.b16 %v448
    %v463 = vunpack.c.l.b16 %v449
    %v464 = vpack.c.b16 %v461, %v460
    %v465 = vpack.c.b16 %v463, %v462
    %v469 = vsel %vm196, %v445, 0
    %471 = vmatprep.subr.bf16.mxu0 0
    %472 = vmatpush1.bf16.msra.mxu0 %v464
    %473 = vmatprep.subr.bf16.mxu0 0
    %474 = vmatpush1.bf16.msra.mxu0 %v465
    %475 = vmatprep.subr.bf16.mxu0 0
    %476 = vmatpush1.bf16.msra.mxu0 0
    %477 = vmatprep.subr.bf16.mxu0 0
    %478 = vmatpush1.bf16.msra.mxu0 0
    %479 = vmatprep.subr.bf16.mxu0 0
    %480 = vmatpush1.bf16.msra.mxu0 0
    %481 = vmatprep.subr.bf16.mxu0 0
    %482 = vmatpush1.bf16.msra.mxu0 0
    %483 = vmatprep.subr.bf16.mxu0 0
    %484 = vmatpush1.bf16.msra.mxu0 0
    %485 = vmatprep.subr.bf16.mxu0 0
    %486 = vmatpush1.bf16.msra.mxu0 0
    %487 = vmatprep.subr.bf16.mxu0 0
    %488 = vmatpush1.bf16.msra.mxu0 0
    %489 = vmatprep.subr.bf16.mxu0 0
    %490 = vmatpush1.bf16.msra.mxu0 0
    %491 = vmatprep.subr.bf16.mxu0 0
    %492 = vmatpush1.bf16.msra.mxu0 0
    %493 = vmatprep.subr.bf16.mxu0 0
    %494 = vmatpush1.bf16.msra.mxu0 0
    %495 = vmatprep.subr.bf16.mxu0 0
    %496 = vmatpush1.bf16.msra.mxu0 0
    %497 = vmatprep.subr.bf16.mxu0 0
    %498 = vmatpush1.bf16.msra.mxu0 0
    %499 = vmatprep.subr.bf16.mxu0 0
    %500 = vmatpush1.bf16.msra.mxu0 0
    %501 = vmatprep.subr.bf16.mxu0 0
    %502 = vmatpush1.bf16.msra.mxu0 0
    %503 = vmatprep.mubr.bf16.mxu0 0
    %504 = vmatmul.mubr.bf16.gmra.mrb[0].mxu0 %v469
    %v505 = vpop.f32.mrb[0].mxu0
    %v506 = vadd.f32 %v454, %v505
    %v507 = vpop.f32.mrb[0].mxu0
    %v508 = vpop.f32.mrb[0].mxu0
    %v509 = vpop.f32.mrb[0].mxu0
    %510 = vdwg.mxu0
    %v511 = vmax.f32 %v506, 0.0
    %v512 = vld [vmem:[%s12] sm:$0x1]
    %v513 = vld [vmem:[%s13] sm:$0x1]
    %v514 = vld [vmem:[%s15] sm:$0x1]
    %v515 = vpack.c.bf16 %v511, %v511
    %v516 = vld [vmem:[%s11] sm:$0xf]
    %v517 = vld [vmem:[%s11 + $0x4] sm:$0xf]
    %v518 = vld [vmem:[%s11 + $0x8] sm:$0xf]
    %v519 = vld [vmem:[%s11 + $0xc] sm:$0xf]
    %v520 = vld [vmem:[%s11 + $0x10] sm:$0xf]
    %v521 = vld [vmem:[%s11 + $0x14] sm:$0xf]
    %v522 = vld [vmem:[%s11 + $0x18] sm:$0xf]
    %v523 = vld [vmem:[%s11 + $0x1c] sm:$0xf]
    %v524 = vld [vmem:[%s11 + $0x20] sm:$0xf]
    %v525 = vld [vmem:[%s11 + $0x24] sm:$0xf]
    %v526 = vld [vmem:[%s11 + $0x28] sm:$0xf]
    %v527 = vld [vmem:[%s11 + $0x2c] sm:$0xf]
    %v528 = vld [vmem:[%s11 + $0x30] sm:$0xf]
    %v529 = vld [vmem:[%s11 + $0x34] sm:$0xf]
    %v530 = vld [vmem:[%s11 + $0x38] sm:$0xf]
    %v531 = vld [vmem:[%s11 + $0x3c] sm:$0xf]
    %v548 = vunpack.c.l.b16 %v516
    %v549 = vunpack.c.l.b16 %v517
    %v550 = vunpack.c.l.b16 %v518
    %v551 = vunpack.c.l.b16 %v519
    %v552 = vunpack.c.l.b16 %v520
    %v553 = vunpack.c.l.b16 %v521
    %v554 = vunpack.c.l.b16 %v522
    %v555 = vunpack.c.l.b16 %v523
    %v556 = vunpack.c.l.b16 %v524
    %v557 = vunpack.c.l.b16 %v525
    %v558 = vunpack.c.l.b16 %v526
    %v559 = vunpack.c.l.b16 %v527
    %v560 = vunpack.c.l.b16 %v528
    %v561 = vunpack.c.l.b16 %v529
    %v562 = vunpack.c.l.b16 %v530
    %v563 = vunpack.c.l.b16 %v531
    %v564 = vpack.c.b16 %v549, %v548
    %v565 = vpack.c.b16 %v551, %v550
    %v566 = vpack.c.b16 %v553, %v552
    %v567 = vpack.c.b16 %v555, %v554
    %v568 = vpack.c.b16 %v557, %v556
    %v569 = vpack.c.b16 %v559, %v558
    %v570 = vpack.c.b16 %v561, %v560
    %v571 = vpack.c.b16 %v563, %v562
    %580 = vmatprep.subr.bf16.mxu0 0
    %581 = vmatpush1.bf16.msra.mxu0 %v564
    %582 = vmatprep.subr.bf16.mxu0 0
    %583 = vmatpush1.bf16.msra.mxu0 %v565
    %584 = vmatprep.subr.bf16.mxu0 0
    %585 = vmatpush1.bf16.msra.mxu0 %v566
    %586 = vmatprep.subr.bf16.mxu0 0
    %587 = vmatpush1.bf16.msra.mxu0 %v567
    %588 = vmatprep.subr.bf16.mxu0 0
    %589 = vmatpush1.bf16.msra.mxu0 %v568
    %590 = vmatprep.subr.bf16.mxu0 0
    %591 = vmatpush1.bf16.msra.mxu0 %v569
    %592 = vmatprep.subr.bf16.mxu0 0
    %593 = vmatpush1.bf16.msra.mxu0 %v570
    %594 = vmatprep.subr.bf16.mxu0 0
    %595 = vmatpush1.bf16.msra.mxu0 %v571
    %596 = vmatprep.subr.bf16.mxu0 0
    %597 = vmatpush1.bf16.msra.mxu0 0
    %598 = vmatprep.subr.bf16.mxu0 0
    %599 = vmatpush1.bf16.msra.mxu0 0
    %600 = vmatprep.subr.bf16.mxu0 0
    %601 = vmatpush1.bf16.msra.mxu0 0
    %602 = vmatprep.subr.bf16.mxu0 0
    %603 = vmatpush1.bf16.msra.mxu0 0
    %604 = vmatprep.subr.bf16.mxu0 0
    %605 = vmatpush1.bf16.msra.mxu0 0
    %606 = vmatprep.subr.bf16.mxu0 0
    %607 = vmatpush1.bf16.msra.mxu0 0
    %608 = vmatprep.subr.bf16.mxu0 0
    %609 = vmatpush1.bf16.msra.mxu0 0
    %610 = vmatprep.subr.bf16.mxu0 0
    %611 = vmatpush1.bf16.msra.mxu0 0
    %612 = vmatprep.mubr.bf16.mxu0 0
    %613 = vmatmul.mubr.bf16.gmra.mrb[0].mxu0 %v515
    %v614 = vpop.f32.mrb[0].mxu0
    %v615 = vadd.f32 0.0, %v614
    %v616 = vpop.f32.mrb[0].mxu0
    %v617 = vpop.f32.mrb[0].mxu0
    %v618 = vpop.f32.mrb[0].mxu0
    %619 = vdwg.mxu0
    %v620 = vsel %vm151, %v615, 0.0
    %v621 = vrot.slane %v620, 4
    %v622 = vadd.f32 %v620, %v621
    %v623 = vrot.slane %v622, 2
    %v624 = vadd.f32 %v622, %v623
    %v625 = vrot.slane %v624, 1
    %v626 = vadd.f32 %v624, %v625
    %v627 = vmul.f32 %v626, %v159
    %v628 = vmul.f32 %v615, %v615
    %v629 = vsel %vm151, %v628, 0.0
    %v630 = vrot.slane %v629, 4
    %v631 = vadd.f32 %v629, %v630
    %v632 = vrot.slane %v631, 2
    %v633 = vadd.f32 %v631, %v632
    %v634 = vrot.slane %v633, 1
    %v635 = vadd.f32 %v633, %v634
    %v636 = vmul.f32 %v635, %v159
    %v637 = vmul.f32 %v627, %v627
    %v638 = vsub.f32 %v636, %v637
    %v639 = vsub.f32 %v615, %v627
    %v640 = vadd.f32 %v638, 1e-05
    %v641 = vrsqrt.pop %v640
    %v642 = vmul.f32 %v639, %v641
    %v644 = vlaneseq
    %v645 = vshrl.u32 %v644, 7
    %v646 = vsub.s32 0, %v645
    %v647 = vrot.slane %v512, %v646
    %v649 = vmul.f32 %v642, %v647
    %v651 = vlaneseq
    %v652 = vshrl.u32 %v651, 7
    %v653 = vsub.s32 0, %v652
    %v654 = vrot.slane %v513, %v653
    %v656 = vadd.f32 %v649, %v654
    %v657 = vmax.f32 %v656, 0.0
    %659 = vrot.lane.b32.xlu0 %v657, 96
    %v660 = vpop.permute.xlu0 %659
    %v662 = vmul.f32 %v657, %v660
    %v663 = vsel %vm196, %v662, -inf
    %664 = vmax.xlane.f32.xlu0 %v663
    %v665 = vpop.xlane.xlu0 %664
    %v666 = vsub.f32 %v662, %v665
    %v667 = vmul.f32 %v666, 1.442695
    %v668 = vpow.pop %v667
    %v669 = vsel %vm196, %v668, 0.0
    %670 = vadd.xlane.f32.xlu0 %v669
    %v671 = vpop.xlane.xlu0 %670
    %v672 = vrcp.pop %v671
    %v673 = vmul.f32 %v668, %v672
    %674 = vrot.lane.b32.xlu0 %v657, 64
    %v675 = vpop.permute.xlu0 %674
    %v677 = vmul.f32 %v673, %v675
    %v678 = vpack.c.bf16 %v677, %v677
    %v679 = vld [vmem:[%s14] sm:$0xf]
    %v680 = vld [vmem:[%s14 + $0x4] sm:$0xf]
    %v681 = vld [vmem:[%s14 + $0x8] sm:$0xf]
    %v682 = vld [vmem:[%s14 + $0xc] sm:$0xf]
    %v684 = vlaneseq
    %v685 = vshrl.u32 %v684, 7
    %v686 = vsub.s32 0, %v685
    %v687 = vrot.slane %v514, %v686
    %v693 = vunpack.c.l.b16 %v679
    %v694 = vunpack.c.l.b16 %v680
    %v695 = vunpack.c.l.b16 %v681
    %v696 = vunpack.c.l.b16 %v682
    %v697 = vpack.c.b16 %v694, %v693
    %v698 = vpack.c.b16 %v696, %v695
    %v702 = vsel %vm196, %v678, 0
    %704 = vmatprep.subr.bf16.mxu0 0
    %705 = vmatpush1.bf16.msra.mxu0 %v697
    %706 = vmatprep.subr.bf16.mxu0 0
    %707 = vmatpush1.bf16.msra.mxu0 %v698
    %708 = vmatprep.subr.bf16.mxu0 0
    %709 = vmatpush1.bf16.msra.mxu0 0
    %710 = vmatprep.subr.bf16.mxu0 0
    %711 = vmatpush1.bf16.msra.mxu0 0
    %712 = vmatprep.subr.bf16.mxu0 0
    %713 = vmatpush1.bf16.msra.mxu0 0
    %714 = vmatprep.subr.bf16.mxu0 0
    %715 = vmatpush1.bf16.msra.mxu0 0
    %716 = vmatprep.subr.bf16.mxu0 0
    %717 = vmatpush1.bf16.msra.mxu0 0
    %718 = vmatprep.subr.bf16.mxu0 0
    %719 = vmatpush1.bf16.msra.mxu0 0
    %720 = vmatprep.subr.bf16.mxu0 0
    %721 = vmatpush1.bf16.msra.mxu0 0
    %722 = vmatprep.subr.bf16.mxu0 0
    %723 = vmatpush1.bf16.msra.mxu0 0
    %724 = vmatprep.subr.bf16.mxu0 0
    %725 = vmatpush1.bf16.msra.mxu0 0
    %726 = vmatprep.subr.bf16.mxu0 0
    %727 = vmatpush1.bf16.msra.mxu0 0
    %728 = vmatprep.subr.bf16.mxu0 0
    %729 = vmatpush1.bf16.msra.mxu0 0
    %730 = vmatprep.subr.bf16.mxu0 0
    %731 = vmatpush1.bf16.msra.mxu0 0
    %732 = vmatprep.subr.bf16.mxu0 0
    %733 = vmatpush1.bf16.msra.mxu0 0
    %734 = vmatprep.subr.bf16.mxu0 0
    %735 = vmatpush1.bf16.msra.mxu0 0
    %736 = vmatprep.mubr.bf16.mxu0 0
    %737 = vmatmul.mubr.bf16.gmra.mrb[0].mxu0 %v702
    %v738 = vpop.f32.mrb[0].mxu0
    %v739 = vadd.f32 %v687, %v738
    %v740 = vpop.f32.mrb[0].mxu0
    %v741 = vpop.f32.mrb[0].mxu0
    %v742 = vpop.f32.mrb[0].mxu0
    %743 = vdwg.mxu0
    %v744 = vmax.f32 %v739, 0.0
    %v745 = vld [vmem:[%s17] sm:$0x1]
    %v746 = vld [vmem:[%s18] sm:$0x1]
    %v747 = vld [vmem:[%s20] sm:$0x1]
    %v748 = vpack.c.bf16 %v744, %v744
    %v749 = vld [vmem:[%s16] sm:$0xf]
    %v750 = vld [vmem:[%s16 + $0x4] sm:$0xf]
    %v751 = vld [vmem:[%s16 + $0x8] sm:$0xf]
    %v752 = vld [vmem:[%s16 + $0xc] sm:$0xf]
    %v753 = vld [vmem:[%s16 + $0x10] sm:$0xf]
    %v754 = vld [vmem:[%s16 + $0x14] sm:$0xf]
    %v755 = vld [vmem:[%s16 + $0x18] sm:$0xf]
    %v756 = vld [vmem:[%s16 + $0x1c] sm:$0xf]
    %v757 = vld [vmem:[%s16 + $0x20] sm:$0xf]
    %v758 = vld [vmem:[%s16 + $0x24] sm:$0xf]
    %v759 = vld [vmem:[%s16 + $0x28] sm:$0xf]
    %v760 = vld [vmem:[%s16 + $0x2c] sm:$0xf]
    %v761 = vld [vmem:[%s16 + $0x30] sm:$0xf]
    %v762 = vld [vmem:[%s16 + $0x34] sm:$0xf]
    %v763 = vld [vmem:[%s16 + $0x38] sm:$0xf]
    %v764 = vld [vmem:[%s16 + $0x3c] sm:$0xf]
    %v781 = vunpack.c.l.b16 %v749
    %v782 = vunpack.c.l.b16 %v750
    %v783 = vunpack.c.l.b16 %v751
    %v784 = vunpack.c.l.b16 %v752
    %v785 = vunpack.c.l.b16 %v753
    %v786 = vunpack.c.l.b16 %v754
    %v787 = vunpack.c.l.b16 %v755
    %v788 = vunpack.c.l.b16 %v756
    %v789 = vunpack.c.l.b16 %v757
    %v790 = vunpack.c.l.b16 %v758
    %v791 = vunpack.c.l.b16 %v759
    %v792 = vunpack.c.l.b16 %v760
    %v793 = vunpack.c.l.b16 %v761
    %v794 = vunpack.c.l.b16 %v762
    %v795 = vunpack.c.l.b16 %v763
    %v796 = vunpack.c.l.b16 %v764
    %v797 = vpack.c.b16 %v782, %v781
    %v798 = vpack.c.b16 %v784, %v783
    %v799 = vpack.c.b16 %v786, %v785
    %v800 = vpack.c.b16 %v788, %v787
    %v801 = vpack.c.b16 %v790, %v789
    %v802 = vpack.c.b16 %v792, %v791
    %v803 = vpack.c.b16 %v794, %v793
    %v804 = vpack.c.b16 %v796, %v795
    %813 = vmatprep.subr.bf16.mxu0 0
    %814 = vmatpush1.bf16.msra.mxu0 %v797
    %815 = vmatprep.subr.bf16.mxu0 0
    %816 = vmatpush1.bf16.msra.mxu0 %v798
    %817 = vmatprep.subr.bf16.mxu0 0
    %818 = vmatpush1.bf16.msra.mxu0 %v799
    %819 = vmatprep.subr.bf16.mxu0 0
    %820 = vmatpush1.bf16.msra.mxu0 %v800
    %821 = vmatprep.subr.bf16.mxu0 0
    %822 = vmatpush1.bf16.msra.mxu0 %v801
    %823 = vmatprep.subr.bf16.mxu0 0
    %824 = vmatpush1.bf16.msra.mxu0 %v802
    %825 = vmatprep.subr.bf16.mxu0 0
    %826 = vmatpush1.bf16.msra.mxu0 %v803
    %827 = vmatprep.subr.bf16.mxu0 0
    %828 = vmatpush1.bf16.msra.mxu0 %v804
    %829 = vmatprep.subr.bf16.mxu0 0
    %830 = vmatpush1.bf16.msra.mxu0 0
    %831 = vmatprep.subr.bf16.mxu0 0
    %832 = vmatpush1.bf16.msra.mxu0 0
    %833 = vmatprep.subr.bf16.mxu0 0
    %834 = vmatpush1.bf16.msra.mxu0 0
    %835 = vmatprep.subr.bf16.mxu0 0
    %836 = vmatpush1.bf16.msra.mxu0 0
    %837 = vmatprep.subr.bf16.mxu0 0
    %838 = vmatpush1.bf16.msra.mxu0 0
    %839 = vmatprep.subr.bf16.mxu0 0
    %840 = vmatpush1.bf16.msra.mxu0 0
    %841 = vmatprep.subr.bf16.mxu0 0
    %842 = vmatpush1.bf16.msra.mxu0 0
    %843 = vmatprep.subr.bf16.mxu0 0
    %844 = vmatpush1.bf16.msra.mxu0 0
    %845 = vmatprep.mubr.bf16.mxu0 0
    %846 = vmatmul.mubr.bf16.gmra.mrb[0].mxu0 %v748
    %v847 = vpop.f32.mrb[0].mxu0
    %v848 = vadd.f32 0.0, %v847
    %v849 = vpop.f32.mrb[0].mxu0
    %v850 = vpop.f32.mrb[0].mxu0
    %v851 = vpop.f32.mrb[0].mxu0
    %852 = vdwg.mxu0
    %v853 = vsel %vm151, %v848, 0.0
    %v854 = vrot.slane %v853, 4
    %v855 = vadd.f32 %v853, %v854
    %v856 = vrot.slane %v855, 2
    %v857 = vadd.f32 %v855, %v856
    %v858 = vrot.slane %v857, 1
    %v859 = vadd.f32 %v857, %v858
    %v860 = vmul.f32 %v859, %v159
    %v861 = vmul.f32 %v848, %v848
    %v862 = vsel %vm151, %v861, 0.0
    %v863 = vrot.slane %v862, 4
    %v864 = vadd.f32 %v862, %v863
    %v865 = vrot.slane %v864, 2
    %v866 = vadd.f32 %v864, %v865
    %v867 = vrot.slane %v866, 1
    %v868 = vadd.f32 %v866, %v867
    %v869 = vmul.f32 %v868, %v159
    %v870 = vmul.f32 %v860, %v860
    %v871 = vsub.f32 %v869, %v870
    %v872 = vsub.f32 %v848, %v860
    %v873 = vadd.f32 %v871, 1e-05
    %v874 = vrsqrt.pop %v873
    %v875 = vmul.f32 %v872, %v874
    %v877 = vlaneseq
    %v878 = vshrl.u32 %v877, 7
    %v879 = vsub.s32 0, %v878
    %v880 = vrot.slane %v745, %v879
    %v882 = vmul.f32 %v875, %v880
    %v884 = vlaneseq
    %v885 = vshrl.u32 %v884, 7
    %v886 = vsub.s32 0, %v885
    %v887 = vrot.slane %v746, %v886
    %v889 = vadd.f32 %v882, %v887
    %v890 = vmax.f32 %v889, 0.0
    %892 = vrot.lane.b32.xlu0 %v890, 96
    %v893 = vpop.permute.xlu0 %892
    %v895 = vmul.f32 %v890, %v893
    %v896 = vsel %vm196, %v895, -inf
    %897 = vmax.xlane.f32.xlu0 %v896
    %v898 = vpop.xlane.xlu0 %897
    %v899 = vsub.f32 %v895, %v898
    %v900 = vmul.f32 %v899, 1.442695
    %v901 = vpow.pop %v900
    %v902 = vsel %vm196, %v901, 0.0
    %903 = vadd.xlane.f32.xlu0 %v902
    %v904 = vpop.xlane.xlu0 %903
    %v905 = vrcp.pop %v904
    %v906 = vmul.f32 %v901, %v905
    %907 = vrot.lane.b32.xlu0 %v890, 64
    %v908 = vpop.permute.xlu0 %907
    %v910 = vmul.f32 %v906, %v908
    %v911 = vpack.c.bf16 %v910, %v910
    %v912 = vld [vmem:[%s19] sm:$0xf]
    %v913 = vld [vmem:[%s19 + $0x4] sm:$0xf]
    %v914 = vld [vmem:[%s19 + $0x8] sm:$0xf]
    %v915 = vld [vmem:[%s19 + $0xc] sm:$0xf]
    %v917 = vlaneseq
    %v918 = vshrl.u32 %v917, 7
    %v919 = vsub.s32 0, %v918
    %v920 = vrot.slane %v747, %v919
    %v926 = vunpack.c.l.b16 %v912
    %v927 = vunpack.c.l.b16 %v913
    %v928 = vunpack.c.l.b16 %v914
    %v929 = vunpack.c.l.b16 %v915
    %v930 = vpack.c.b16 %v927, %v926
    %v931 = vpack.c.b16 %v929, %v928
    %v935 = vsel %vm196, %v911, 0
    %937 = vmatprep.subr.bf16.mxu0 0
    %938 = vmatpush1.bf16.msra.mxu0 %v930
    %939 = vmatprep.subr.bf16.mxu0 0
    %940 = vmatpush1.bf16.msra.mxu0 %v931
    %941 = vmatprep.subr.bf16.mxu0 0
    %942 = vmatpush1.bf16.msra.mxu0 0
    %943 = vmatprep.subr.bf16.mxu0 0
    %944 = vmatpush1.bf16.msra.mxu0 0
    %945 = vmatprep.subr.bf16.mxu0 0
    %946 = vmatpush1.bf16.msra.mxu0 0
    %947 = vmatprep.subr.bf16.mxu0 0
    %948 = vmatpush1.bf16.msra.mxu0 0
    %949 = vmatprep.subr.bf16.mxu0 0
    %950 = vmatpush1.bf16.msra.mxu0 0
    %951 = vmatprep.subr.bf16.mxu0 0
    %952 = vmatpush1.bf16.msra.mxu0 0
    %953 = vmatprep.subr.bf16.mxu0 0
    %954 = vmatpush1.bf16.msra.mxu0 0
    %955 = vmatprep.subr.bf16.mxu0 0
    %956 = vmatpush1.bf16.msra.mxu0 0
    %957 = vmatprep.subr.bf16.mxu0 0
    %958 = vmatpush1.bf16.msra.mxu0 0
    %959 = vmatprep.subr.bf16.mxu0 0
    %960 = vmatpush1.bf16.msra.mxu0 0
    %961 = vmatprep.subr.bf16.mxu0 0
    %962 = vmatpush1.bf16.msra.mxu0 0
    %963 = vmatprep.subr.bf16.mxu0 0
    %964 = vmatpush1.bf16.msra.mxu0 0
    %965 = vmatprep.subr.bf16.mxu0 0
    %966 = vmatpush1.bf16.msra.mxu0 0
    %967 = vmatprep.subr.bf16.mxu0 0
    %968 = vmatpush1.bf16.msra.mxu0 0
    %969 = vmatprep.mubr.bf16.mxu0 0
    %970 = vmatmul.mubr.bf16.gmra.mrb[0].mxu0 %v935
    %v971 = vpop.f32.mrb[0].mxu0
    %v972 = vadd.f32 %v920, %v971
    %v973 = vpop.f32.mrb[0].mxu0
    %v974 = vpop.f32.mrb[0].mxu0
    %v975 = vpop.f32.mrb[0].mxu0
    %976 = vdwg.mxu0
    %v977 = vmax.f32 %v972, 0.0
    %978 = vst.msk [vmem:[#allocation2] sm:$0xff] %vm196, %v977
    // Predicated region
    $region86: #{gnn_forward_pallas.1} parent=1 // pred_check
      _
    $region87: #{gnn_forward_pallas.1} parent=1 // pred_check_branch
      %980 = sbr.rel (0) target = $region89
    $region88: #{gnn_forward_pallas.1} parent=1 // pred_region
      %s982 = ssub.s32 128, 128
      %983 = vsyncadd [#allocation3], %s982
      %s985 = sshll.u32 [#allocation2], 4
      %s986 = int_to_ptr.vmem [resolvable:$true] %s985
      %988 = dma.vmem_to_hbm [thread:$0]  %s986, 128, %s21, [#allocation3]
    $region89: #{gnn_forward_pallas.1} parent=1 // pred_fallthru
      _
    // Predicated region
    $region90: #{gnn_forward_pallas.1} parent=1 // pred_check
      _
    $region91: #{gnn_forward_pallas.1} parent=1 // pred_check_branch
      %990 = sbr.rel (0) target = $region93
    $region92: #{gnn_forward_pallas.1} parent=1 // pred_region
      %991 = dma.done [#allocation3], 128
    $region93: #{gnn_forward_pallas.1} parent=1 // pred_fallthru
      _
    %992 = vsyncpa [#allocation3], 1

</llo_original>
